<compile_context>
chip_gen: v6e
topology: v6e:2x2x1
jax: 0.10.0
libtpu: 0.0.40
codegen_flags: <defaults>
</compile_context>

<pallas_src>
import jax
import jax.numpy as jnp
from jax.experimental import pallas as pl
from jax.experimental.pallas import tpu as pltpu


# ---------------------------------------------------------------------------
# Path 1 (default): direct HBM -> HBM DMA copy — no VMEM round trip.
# ---------------------------------------------------------------------------
def _make_dma_clone_kernel(chunk_bounds):
    """Build a kernel that clones an (N, C) HBM array via row-chunked DMAs."""
    n_chunks = len(chunk_bounds) - 1

    def kernel(x_ref, o_ref, sems):
        # Issue every chunk DMA first (they run concurrently on the DMA
        # engines), then wait on all of them.  n_chunks is tiny (<= 4), so
        # the static Python unroll is fine.
        copies = []
        for i in range(n_chunks):
            start = chunk_bounds[i]
            size = chunk_bounds[i + 1] - chunk_bounds[i]
            cp = pltpu.make_async_copy(
                x_ref.at[pl.ds(start, size)],
                o_ref.at[pl.ds(start, size)],
                sems.at[i],
            )
            cp.start()
            copies.append(cp)
        for cp in copies:
            cp.wait()

    return kernel, n_chunks


def _fcgf_copy_dma(features, *, max_chunks=4, min_chunk_bytes=1 << 20):
    N, C = features.shape
    itemsize = jnp.dtype(features.dtype).itemsize
    total_bytes = N * C * itemsize

    # A few large concurrent DMAs saturate HBM bandwidth; never split below
    # ~1 MiB per chunk (per-DMA overhead would dominate).
    n_chunks = int(max(1, min(max_chunks, total_bytes // min_chunk_bytes, N)))
    base, rem = divmod(N, n_chunks)
    bounds = [0]
    for i in range(n_chunks):
        bounds.append(bounds[-1] + base + (1 if i < rem else 0))

    kernel, n_chunks = _make_dma_clone_kernel(tuple(bounds))

    return pl.pallas_call(
        kernel,
        out_shape=jax.ShapeDtypeStruct((N, C), features.dtype),
        in_specs=[pl.BlockSpec(memory_space=pl.ANY)],   # raw HBM ref, no auto-DMA
        out_specs=pl.BlockSpec(memory_space=pl.ANY),    # raw HBM ref, we DMA into it
        scratch_shapes=[pltpu.SemaphoreType.DMA((n_chunks,))],
    )(features)


# ---------------------------------------------------------------------------
# Path 2: lane-dense tiled copy through VMEM (1-D grid over rows).
# ---------------------------------------------------------------------------
def _clone_kernel(x_ref, o_ref):
    # Pure copy: reproduces `features.clone().detach()` semantics.
    o_ref[...] = x_ref[...]


def _fcgf_copy_vmem(features, *, target_block_bytes=4 << 20):
    N, C = features.shape
    itemsize = jnp.dtype(features.dtype).itemsize

    # Packed sublane quantum: 8 rows (f32), 16 (bf16/f16), 32 (int8/fp8).
    sublane = 8 * max(1, 4 // itemsize)
    row_bytes = C * itemsize

    # Largest sublane-aligned row stripe near the target block size.
    tile_n = max(sublane, (target_block_bytes // max(row_bytes, 1)) // sublane * sublane)
    if tile_n >= N:
        tile_n = N  # single full-extent block (always a legal block shape)

    grid = (pl.cdiv(N, tile_n),)  # ragged last block is masked by Pallas
    block_bytes = tile_n * row_bytes
    # 2 double-buffered input tiles + 2 output tiles, plus headroom; keep it
    # well below v7x's 64 MiB physical VMEM.
    vmem_limit = int(min(max(4 * block_bytes + (2 << 20), 16 << 20), 64 << 20))

    return pl.pallas_call(
        _clone_kernel,
        out_shape=jax.ShapeDtypeStruct((N, C), features.dtype),
        grid=grid,
        in_specs=[pl.BlockSpec((tile_n, C), lambda i: (i, 0))],
        out_specs=pl.BlockSpec((tile_n, C), lambda i: (i, 0)),
        compiler_params=pltpu.CompilerParams(
            dimension_semantics=("parallel",),  # shard stripes across TCs (v7x)
            vmem_limit_bytes=vmem_limit,
        ),
    )(features)


# ---------------------------------------------------------------------------
# Public wrapper + module port.
# ---------------------------------------------------------------------------
_TINY_BYTES = 64 << 10  # below this a Pallas launch is pure overhead


def fcgf_forward(features, *, method="dma"):
    """FCGF.forward: returns a fresh copy of batch['features'] of shape (N, C)."""
    if features.ndim != 2:
        raise ValueError("FCGF features are expected to be (N, C)")
    if method == "dma":
        return _fcgf_copy_dma(features)
    if method == "vmem":
        return _fcgf_copy_vmem(features)
    raise ValueError(f"unknown method: {method!r}")


class FCGF:
    """JAX/Pallas port of models/backbone_fcgf.py::FCGF."""

    def __init__(self, config=None):
        # Original __init__ defines no parameters; nothing to initialize.
        self.config = config

    def forward(self, batch, phase="encode"):
        x = batch["features"]
        # Tiny inputs: XLA's native copy is already optimal; skip the custom call.
        if x.size * jnp.dtype(x.dtype).itemsize < _TINY_BYTES:
            return jnp.copy(x)
        # `.clone().detach()` + `.to('cuda:0')` == fresh device array copy.
        return fcgf_forward(x)

    __call__ = forward


if __name__ == "__main__":
    key = jax.random.PRNGKey(0)
    # Small FCGF-like feature tensor: N points x C channels.  N is chosen
    # non-multiple-of-8/128 to exercise ragged handling in both paths.
    N, C = 1037, 128
    features = jax.random.normal(key, (N, C), dtype=jnp.float32)

    model = FCGF(config=None)

    # Default (HBM->HBM DMA) path via the module wrapper.
    out = jax.block_until_ready(model({"features": features}))
    assert out.shape == features.shape and out.dtype == features.dtype
    assert bool(jnp.all(out == features))

    # Lane-dense VMEM-tiled path.
    out_vmem = jax.block_until_ready(fcgf_forward(features, method="vmem"))
    assert out_vmem.shape == features.shape and out_vmem.dtype == features.dtype
    assert bool(jnp.all(out_vmem == features))

    # Tiny-input fast path (plain jnp.copy).
    tiny = jax.random.normal(jax.random.PRNGKey(1), (16, 32), dtype=jnp.float32)
    out_tiny = jax.block_until_ready(model({"features": tiny}))
    assert bool(jnp.all(out_tiny == tiny))

    print("KERNEL_OK")
</pallas_src>

<mosaic_0001>
module attributes {stable_mosaic.version = 11 : i64} {
  func.func @kernel(%arg0: memref<1037x128xf32, #tpu.memory_space<any>>, %arg1: memref<1037x128xf32, #tpu.memory_space<any>>, %arg2: memref<1x!tpu.dma_semaphore, #tpu.memory_space<semaphore_mem>>) attributes {dimension_semantics = [], scalar_prefetch = 0 : i64, scratch_operands = 1 : i64, tpu.core_type = #tpu.core_type<tc>} {
    %c0_i32 = arith.constant 0 : i32
    %c0_i32_0 = arith.constant 0 : i32
    %c0_i32_1 = arith.constant 0 : i32
    %0 = tpu.memref_slice %arg0[%c0_i32_0, %c0_i32_1] : memref<1037x128xf32, #tpu.memory_space<any>> -> memref<1037x128xf32, #tpu.memory_space<any>>
    %c0_i32_2 = arith.constant 0 : i32
    %c0_i32_3 = arith.constant 0 : i32
    %1 = tpu.memref_slice %arg1[%c0_i32_2, %c0_i32_3] : memref<1037x128xf32, #tpu.memory_space<any>> -> memref<1037x128xf32, #tpu.memory_space<any>>
    %2 = tpu.memref_slice %arg2[%c0_i32] : memref<1x!tpu.dma_semaphore, #tpu.memory_space<semaphore_mem>> -> memref<1x!tpu.dma_semaphore, #tpu.memory_space<semaphore_mem>>
    %3 = tpu.memref_squeeze %2 : memref<1x!tpu.dma_semaphore, #tpu.memory_space<semaphore_mem>> -> memref<!tpu.dma_semaphore, #tpu.memory_space<semaphore_mem>>
    tpu.enqueue_dma source(%0 : memref<1037x128xf32, #tpu.memory_space<any>>) target(%1 : memref<1037x128xf32, #tpu.memory_space<any>>) target_semaphore(%3 : memref<!tpu.dma_semaphore, #tpu.memory_space<semaphore_mem>>)
    %c0_i32_4 = arith.constant 0 : i32
    %c0_i32_5 = arith.constant 0 : i32
    %c0_i32_6 = arith.constant 0 : i32
    %4 = tpu.memref_slice %arg0[%c0_i32_5, %c0_i32_6] : memref<1037x128xf32, #tpu.memory_space<any>> -> memref<1037x128xf32, #tpu.memory_space<any>>
    %c0_i32_7 = arith.constant 0 : i32
    %c0_i32_8 = arith.constant 0 : i32
    %5 = tpu.memref_slice %arg1[%c0_i32_7, %c0_i32_8] : memref<1037x128xf32, #tpu.memory_space<any>> -> memref<1037x128xf32, #tpu.memory_space<any>>
    %6 = tpu.memref_slice %arg2[%c0_i32_4] : memref<1x!tpu.dma_semaphore, #tpu.memory_space<semaphore_mem>> -> memref<1x!tpu.dma_semaphore, #tpu.memory_space<semaphore_mem>>
    %7 = tpu.memref_squeeze %6 : memref<1x!tpu.dma_semaphore, #tpu.memory_space<semaphore_mem>> -> memref<!tpu.dma_semaphore, #tpu.memory_space<semaphore_mem>>
    tpu.wait_dma2 semaphore(%7 : memref<!tpu.dma_semaphore, #tpu.memory_space<semaphore_mem>>) src(%4 : memref<1037x128xf32, #tpu.memory_space<any>>) dst(%5 : memref<1037x128xf32, #tpu.memory_space<any>>)
    return
  }
}

</mosaic_0001>

<llo_original>
// kernel: tpu_custom_call.1
$region0: #{tpu_custom_call.1}
  #allocation0 [shape = 'u32[]', space=smem, size = 0x4, offset = 0x4, fixed_abs, tag = 'smem constant byte address 0x4 - core index']
  #allocation1 [shape = 'u32[144,128]{1,0:T(1,128)}', space=vmem, size = 0x12000, scoped, tag = 'internal scratch']
  #allocation2 [shape = 's32[1]{0}', space=sflag, size = 0x4, scoped, tag = 'scratch operand']
  #allocation3 [shape = 's32[]', space=sflag, size = 0x4, offset = 0, fixed_abs, tag = 'sflag constant byte address 0x0 - dummy sync flag']
  #allocation4 [shape = 'u32[0]{0}', space=smem, size = 0, offset = 0, fixed_abs, tag = 'smem constant byte address 0x0 - null']
  %s0 = inlined_call_operand.hbm [shape: f32[1037,128], index: 0, kind: input, shape index: {}]
  %s1 = inlined_call_operand.hbm [shape: f32[1037,128], index: 1, kind: output, shape index: {}]
  %s2 = sld [smem:[#allocation0]]
  $region2: #{tpu_custom_call.1} parent=0
    _
  %s4 = ssub.s32 1, %s2
  %s5 = scalar_select 0, %s4, %s2
  %s7 = sshll.u32 1, 14
  %s8 = sxor.u32 4294967295, %s7
  %12 = dma.general %s0, 16592, %s1, [#allocation2], 131072, [#allocation4], 0, 0
  %s13 = smul.u32 1037, 1
  %s14 = sshll.u32 %s13, 4
  %15 = dma.done [#allocation2], %s14
  %16 = vsyncmov [#allocation2]
  %s17 = vpop.sfrf %16
  %p18 = scmp.eq.s32.totalorder %s17, 0
  %p19 = pneg %p18
  %21 = shalt.err (%p19)

</llo_original>
